<compile_context>
chip_gen: v6e
topology: v6e:2x2x1
jax: 0.10.0
libtpu: 0.0.40
codegen_flags: <defaults>
</compile_context>

<pallas_src>
import numpy as np
import jax
import jax.numpy as jnp
from jax import lax
from jax.experimental import pallas as pl
from jax.experimental.pallas import tpu as pltpu

# ---- BrainwaveConfig defaults, 'alpha' frequency band -----------------------
MAX_NORM = 10.0        # config.max_norm
LN_EPS = 1e-5          # config.layer_norm_eps
EPS = 1e-8             # config.eps
BETA = 0.5             # config.alpha_beta
WINDOW = 16            # config.alpha_window
K = 5                  # kernel_size = min(window_size, 5) -> 5 (odd)
PAD = K // 2
EMA_ALPHA = 1.0 / max(WINDOW, 1)


def _make_kernel(S: int, BS: int, D: int):
    """One grid step processes BS = batch_tile * S flattened (batch, seq) rows."""

    def kernel(x_ref, fnorm_ref, wk_ref, bias_ref, fmat_ref, ema_ref,
               lng_ref, lnb_ref, o_ref):
        # 1) frequency filter (L2-normalized on host) + clamp
        xf = jnp.clip(x_ref[...] * fnorm_ref[...], -MAX_NORM, MAX_NORM)  # (BS, D) f32

        # 2) grouped temporal Conv1d as ONE stacked matmul (BS, K*D) @ (K*D, D).
        #    Tap k needs xf[b, t + k - PAD] (zero outside [0, S)); build shifted
        #    copies of the flattened slab with XLU sublane rolls and mask the
        #    out-of-range / batch-crossing rows with a per-batch seq index.
        t_mod = lax.broadcasted_iota(jnp.int32, (BS, 1), 0) % S           # (BS, 1)
        taps = []
        for k in range(K):                        # static unroll, K = 5
            s = k - PAD                           # tap k reads xf[t + s]
            if s == 0:
                tap = xf
            else:
                rolled = pltpu.roll(xf, shift=(-s) % BS, axis=0)  # rolled[t] = xf[t+s]
                mask = (t_mod >= -s) if s < 0 else (t_mod < S - s)
                tap = jnp.where(mask, rolled, 0.0)
            taps.append(tap.astype(jnp.bfloat16))
        x_stack = jnp.concatenate(taps, axis=-1)                          # (BS, K*D) bf16
        conv = jnp.dot(x_stack, wk_ref[...],
                       preferred_element_type=jnp.float32) + bias_ref[...]

        # 3) 'alpha' band activation = Tanh, plus 0.1 residual of filtered input
        activated = jnp.tanh(conv) + xf * 0.1

        # 4) fractal 1/f^beta shaping: rfft->scale->irfft folded into a
        #    block-diagonal (BS, BS) f32 operator, applied as one MXU matmul.
        fract = jnp.dot(fmat_ref[...], activated,
                        preferred_element_type=jnp.float32)
        fract = jnp.clip(fract, -MAX_NORM, MAX_NORM)

        # 5) LayerNorm over d_model (biased variance, like torch.nn.LayerNorm)
        mean = jnp.mean(fract, axis=-1, keepdims=True)
        var = jnp.mean((fract - mean) ** 2, axis=-1, keepdims=True)
        normed = (fract - mean) * lax.rsqrt(var + LN_EPS)
        normed = normed * lng_ref[...] + lnb_ref[...]

        # 6) temporal-memory EMA (out[0]=n[0]; out[t]=a*n[t]+(1-a)*out[t-1]) as a
        #    block-diagonal lower-triangular (BS, BS) f32 matmul; one full-width
        #    lane-dense (BS, D) store.
        o_ref[...] = jnp.dot(ema_ref[...], normed,
                             preferred_element_type=jnp.float32)
        # 7) dropout: identity (eval mode)

    return kernel


# ---- host-side precomputed operators ----------------------------------------
def _fractal_operator(S: int) -> np.ndarray:
    """(S, S) real linear map equal to irfft(rfft(x) * 1/clip(|f|+eps)^beta)."""
    freqs = np.fft.rfftfreq(S)
    scaling = 1.0 / np.clip((np.abs(freqs) + EPS) ** BETA, EPS, 1e6)
    F = np.fft.rfft(np.eye(S, dtype=np.float32), axis=0)      # (S//2+1, S) complex
    return np.fft.irfft(F * scaling[:, None], n=S, axis=0).astype(np.float32)


def _ema_operator(S: int) -> np.ndarray:
    """Lower-triangular (S, S) operator for the EMA recurrence."""
    a = EMA_ALPHA
    t_idx = np.arange(S)[:, None]
    k_idx = np.arange(S)[None, :]
    decay = (1.0 - a) ** np.maximum(t_idx - k_idx, 0)
    ema = np.where(k_idx == 0, (1.0 - a) ** t_idx, a * decay)
    return np.tril(ema).astype(np.float32)


def _block_diag(mat: np.ndarray, n: int) -> np.ndarray:
    s = mat.shape[0]
    out = np.zeros((n * s, n * s), mat.dtype)
    for i in range(n):
        out[i * s:(i + 1) * s, i * s:(i + 1) * s] = mat
    return out


def _pick_batch_tile(B: int, S: int) -> int:
    """Largest divisor of B not exceeding ceil(128/S): folds enough batch rows
    into one grid step for a healthy MXU M dimension while keeping a batch-tiled
    grid (v7x megacore) when B is large."""
    target = max(1, -(-128 // S))          # ceil(128 / S)
    bt = min(B, target)
    while B % bt:
        bt -= 1
    return bt


def brainwave_processor(x, params):
    """x: (B, S, D) float32 -> (B, S, D) float32."""
    B, S, D = x.shape
    G = min(D // 4, 8)
    Dg = D // G
    BT = _pick_batch_tile(B, S)
    BS = BT * S                              # rows per grid step (32 at demo size)

    filt = params["frequency_filter"]        # (D,)
    conv_w = params["conv_weight"]           # (D, D//G, K)
    conv_b = params["conv_bias"]             # (D,)
    ln_g = params["ln_gamma"]                # (D,)
    ln_b = params["ln_beta"]                 # (D,)

    # F.normalize(filter, p=2, dim=0)
    fnorm = (filt / jnp.maximum(jnp.linalg.norm(filt), 1e-12)).reshape(1, D)

    # Block-diagonal per-tap conv weights stacked along the contraction axis:
    # W_stack[k*D + ci, co], so one (BS, K*D) @ (K*D, D) matmul does all taps.
    # (Dense zero-padded form is fine at D=128; for large D restructure as a
    #  grouped dot_general instead of an ~8x zero-padded contraction.)
    w_r = conv_w.reshape(G, Dg, Dg, K)                        # (g, co_l, ci_l, k)
    wk_blocks = jnp.transpose(w_r, (0, 3, 2, 1))              # (g, k, ci_l, co_l)
    Wk = jnp.zeros((K, D, D), jnp.float32)
    for g in range(G):
        Wk = Wk.at[:, g * Dg:(g + 1) * Dg, g * Dg:(g + 1) * Dg].set(wk_blocks[g])
    W_stack = Wk.reshape(K * D, D).astype(jnp.bfloat16)       # (K*D, D) bf16
    bias = conv_b.reshape(1, D)

    # (BT*S, BT*S) block-diagonal fractal / EMA operators, kept in f32.
    fmat_big = jnp.asarray(_block_diag(_fractal_operator(S), BT))   # (BS, BS) f32
    ema_big = jnp.asarray(_block_diag(_ema_operator(S), BT))        # (BS, BS) f32

    x2d = x.reshape(B * S, D)                 # free reshape (contiguous)
    kernel = _make_kernel(S, BS, D)

    out2d = pl.pallas_call(
        kernel,
        out_shape=jax.ShapeDtypeStruct((B * S, D), jnp.float32),
        grid=(B // BT,),
        in_specs=[
            pl.BlockSpec((BS, D), lambda i: (i, 0)),      # x (batch-tile slab)
            pl.BlockSpec((1, D), lambda i: (0, 0)),       # normalized filter
            pl.BlockSpec((K * D, D), lambda i: (0, 0)),   # stacked conv weights
            pl.BlockSpec((1, D), lambda i: (0, 0)),       # conv bias
            pl.BlockSpec((BS, BS), lambda i: (0, 0)),     # fractal operator (f32)
            pl.BlockSpec((BS, BS), lambda i: (0, 0)),     # EMA operator (f32)
            pl.BlockSpec((1, D), lambda i: (0, 0)),       # layernorm gamma
            pl.BlockSpec((1, D), lambda i: (0, 0)),       # layernorm beta
        ],
        out_specs=pl.BlockSpec((BS, D), lambda i: (i, 0)),
        compiler_params=pltpu.CompilerParams(dimension_semantics=("parallel",)),
    )(x2d, fnorm, W_stack, bias, fmat_big, ema_big,
      ln_g.reshape(1, D), ln_b.reshape(1, D))
    return out2d.reshape(B, S, D)


if __name__ == "__main__":
    B, S, D = 2, 16, 128          # small shapes consistent with the module
    G = min(D // 4, 8)
    Dg = D // G

    key = jax.random.PRNGKey(0)
    kf, kw, kx = jax.random.split(key, 3)

    # Deterministic synthetic parameters (shapes from BrainwaveProcessor.__init__)
    bound = float(np.sqrt(6.0 / (Dg * K + D * K)))            # xavier_uniform bound
    params = {
        "frequency_filter": jax.random.normal(kf, (D,), jnp.float32) * 0.02,
        "conv_weight": jax.random.uniform(kw, (D, Dg, K), jnp.float32,
                                          minval=-bound, maxval=bound),
        "conv_bias": jnp.zeros((D,), jnp.float32),
        "ln_gamma": jnp.ones((D,), jnp.float32),
        "ln_beta": jnp.zeros((D,), jnp.float32),
    }

    x = jax.random.normal(kx, (B, S, D), jnp.float32)
    out = brainwave_processor(x, params)
    jax.block_until_ready(out)
    assert out.shape == (B, S, D) and out.dtype == jnp.float32
    print("KERNEL_OK")
</pallas_src>

<mosaic_0001>
module attributes {stable_mosaic.version = 11 : i64} {
  func.func @kernel(%arg0: i32, %arg1: memref<32x128xf32, #tpu.memory_space<vmem>>, %arg2: memref<1x128xf32, #tpu.memory_space<vmem>>, %arg3: memref<640x128xbf16, #tpu.memory_space<vmem>>, %arg4: memref<1x128xf32, #tpu.memory_space<vmem>>, %arg5: memref<32x32xf32, #tpu.memory_space<vmem>>, %arg6: memref<32x32xf32, #tpu.memory_space<vmem>>, %arg7: memref<1x128xf32, #tpu.memory_space<vmem>>, %arg8: memref<1x128xf32, #tpu.memory_space<vmem>>, %arg9: memref<32x128xf32, #tpu.memory_space<vmem>>) attributes {dimension_semantics = [#tpu.dimension_semantics<parallel>], iteration_bounds = array<i64: 1>, scalar_prefetch = 0 : i64, scratch_operands = 0 : i64, tpu.core_type = #tpu.core_type<tc>, window_params = [{transform_indices = @transform_0, window_bounds = array<i64: 32, 128>}, {pipeline_mode = #tpu.pipeline_mode<synchronous>, transform_indices = @transform_1, window_bounds = array<i64: 1, 128>}, {pipeline_mode = #tpu.pipeline_mode<synchronous>, transform_indices = @transform_2, window_bounds = array<i64: 640, 128>}, {pipeline_mode = #tpu.pipeline_mode<synchronous>, transform_indices = @transform_3, window_bounds = array<i64: 1, 128>}, {pipeline_mode = #tpu.pipeline_mode<synchronous>, transform_indices = @transform_4, window_bounds = array<i64: 32, 32>}, {pipeline_mode = #tpu.pipeline_mode<synchronous>, transform_indices = @transform_5, window_bounds = array<i64: 32, 32>}, {pipeline_mode = #tpu.pipeline_mode<synchronous>, transform_indices = @transform_6, window_bounds = array<i64: 1, 128>}, {pipeline_mode = #tpu.pipeline_mode<synchronous>, transform_indices = @transform_7, window_bounds = array<i64: 1, 128>}, {transform_indices = @transform_8, window_bounds = array<i64: 32, 128>}]} {
    %c0 = arith.constant 0 : index
    %c0_0 = arith.constant 0 : index
    %0 = vector.load %arg1[%c0, %c0_0] : memref<32x128xf32, #tpu.memory_space<vmem>>, vector<32x128xf32>
    %c0_1 = arith.constant 0 : index
    %c0_2 = arith.constant 0 : index
    %1 = vector.load %arg2[%c0_1, %c0_2] : memref<1x128xf32, #tpu.memory_space<vmem>>, vector<1x128xf32>
    %2 = vector.broadcast %1 : vector<1x128xf32> to vector<32x128xf32>
    %3 = arith.mulf %0, %2 : vector<32x128xf32>
    %cst = arith.constant -1.000000e+01 : f32
    %cst_3 = arith.constant 1.000000e+01 : f32
    %4 = vector.broadcast %cst : f32 to vector<32x128xf32>
    %5 = arith.maximumf %4, %3 : vector<32x128xf32>
    %6 = vector.broadcast %cst_3 : f32 to vector<32x128xf32>
    %7 = arith.minimumf %6, %5 : vector<32x128xf32>
    %8 = tpu.iota {dimensions = array<i32: 0>} : vector<32x1xi32>
    %c16_i32 = arith.constant 16 : i32
    %c0_i32 = arith.constant 0 : i32
    %9 = arith.cmpi eq, %c16_i32, %c0_i32 : i32
    %c1_i32 = arith.constant 1 : i32
    %10 = arith.select %9, %c1_i32, %c16_i32 : i32
    %11 = vector.broadcast %10 : i32 to vector<32x1xi32>
    %12 = arith.remsi %8, %11 : vector<32x1xi32>
    %c0_i32_4 = arith.constant 0 : i32
    %13 = vector.broadcast %c0_i32_4 : i32 to vector<32x1xi32>
    %14 = arith.cmpi ne, %12, %13 : vector<32x1xi32>
    %c0_i32_5 = arith.constant 0 : i32
    %15 = vector.broadcast %c0_i32_5 : i32 to vector<32x1xi32>
    %16 = arith.cmpi slt, %12, %15 : vector<32x1xi32>
    %c0_i32_6 = arith.constant 0 : i32
    %17 = arith.cmpi slt, %10, %c0_i32_6 : i32
    %18 = vector.broadcast %17 : i1 to vector<32x1xi1>
    %19 = vector.broadcast %18 : vector<32x1xi1> to vector<32x1xi1>
    %20 = arith.xori %16, %19 : vector<32x1xi1>
    %21 = arith.andi %20, %14 : vector<32x1xi1>
    %22 = vector.broadcast %10 : i32 to vector<32x1xi32>
    %23 = arith.addi %12, %22 : vector<32x1xi32>
    %24 = arith.select %21, %23, %12 : vector<32x1xi1>, vector<32x1xi32>
    %c2_i32 = arith.constant 2 : i32
    %25 = tpu.dynamic_rotate %7 by %c2_i32 dim 0 : vector<32x128xf32>, i32 -> vector<32x128xf32>
    %c2_i32_7 = arith.constant 2 : i32
    %26 = vector.broadcast %c2_i32_7 : i32 to vector<32x1xi32>
    %27 = arith.cmpi sge, %24, %26 : vector<32x1xi32>
    %cst_8 = arith.constant 0.000000e+00 : f32
    %28 = vector.shape_cast %27 : vector<32x1xi1> to vector<32x1xi1>
    %29 = vector.broadcast %28 : vector<32x1xi1> to vector<32x128xi1>
    %30 = vector.broadcast %cst_8 : f32 to vector<32x128xf32>
    %31 = arith.select %29, %25, %30 : vector<32x128xi1>, vector<32x128xf32>
    %32 = arith.truncf %31 : vector<32x128xf32> to vector<32x128xbf16>
    %c1_i32_9 = arith.constant 1 : i32
    %33 = tpu.dynamic_rotate %7 by %c1_i32_9 dim 0 : vector<32x128xf32>, i32 -> vector<32x128xf32>
    %c1_i32_10 = arith.constant 1 : i32
    %34 = vector.broadcast %c1_i32_10 : i32 to vector<32x1xi32>
    %35 = arith.cmpi sge, %24, %34 : vector<32x1xi32>
    %cst_11 = arith.constant 0.000000e+00 : f32
    %36 = vector.shape_cast %35 : vector<32x1xi1> to vector<32x1xi1>
    %37 = vector.broadcast %36 : vector<32x1xi1> to vector<32x128xi1>
    %38 = vector.broadcast %cst_11 : f32 to vector<32x128xf32>
    %39 = arith.select %37, %33, %38 : vector<32x128xi1>, vector<32x128xf32>
    %40 = arith.truncf %39 : vector<32x128xf32> to vector<32x128xbf16>
    %41 = arith.truncf %7 : vector<32x128xf32> to vector<32x128xbf16>
    %c31_i32 = arith.constant 31 : i32
    %42 = tpu.dynamic_rotate %7 by %c31_i32 dim 0 : vector<32x128xf32>, i32 -> vector<32x128xf32>
    %c15_i32 = arith.constant 15 : i32
    %43 = vector.broadcast %c15_i32 : i32 to vector<32x1xi32>
    %44 = arith.cmpi slt, %24, %43 : vector<32x1xi32>
    %cst_12 = arith.constant 0.000000e+00 : f32
    %45 = vector.shape_cast %44 : vector<32x1xi1> to vector<32x1xi1>
    %46 = vector.broadcast %45 : vector<32x1xi1> to vector<32x128xi1>
    %47 = vector.broadcast %cst_12 : f32 to vector<32x128xf32>
    %48 = arith.select %46, %42, %47 : vector<32x128xi1>, vector<32x128xf32>
    %49 = arith.truncf %48 : vector<32x128xf32> to vector<32x128xbf16>
    %c30_i32 = arith.constant 30 : i32
    %50 = tpu.dynamic_rotate %7 by %c30_i32 dim 0 : vector<32x128xf32>, i32 -> vector<32x128xf32>
    %c14_i32 = arith.constant 14 : i32
    %51 = vector.broadcast %c14_i32 : i32 to vector<32x1xi32>
    %52 = arith.cmpi slt, %24, %51 : vector<32x1xi32>
    %cst_13 = arith.constant 0.000000e+00 : f32
    %53 = vector.shape_cast %52 : vector<32x1xi1> to vector<32x1xi1>
    %54 = vector.broadcast %53 : vector<32x1xi1> to vector<32x128xi1>
    %55 = vector.broadcast %cst_13 : f32 to vector<32x128xf32>
    %56 = arith.select %54, %50, %55 : vector<32x128xi1>, vector<32x128xf32>
    %57 = arith.truncf %56 : vector<32x128xf32> to vector<32x128xbf16>
    %58 = tpu.concatenate %32, %40, %41, %49, %57 in 1 : vector<32x128xbf16>, vector<32x128xbf16>, vector<32x128xbf16>, vector<32x128xbf16>, vector<32x128xbf16> -> vector<32x640xbf16>
    %c0_14 = arith.constant 0 : index
    %c0_15 = arith.constant 0 : index
    %59 = vector.load %arg3[%c0_14, %c0_15] : memref<640x128xbf16, #tpu.memory_space<vmem>>, vector<640x128xbf16>
    %cst_16 = arith.constant dense<0.000000e+00> : vector<32x128xf32>
    %60 = tpu.matmul %58, %59, %cst_16 {dimension_numbers = #tpu.dot_dimension_numbers<[1], [0], [0], [1], [0, 0, 1, 1], [], []>} : vector<32x640xbf16>, vector<640x128xbf16>, vector<32x128xf32> -> vector<32x128xf32>
    %c0_17 = arith.constant 0 : index
    %c0_18 = arith.constant 0 : index
    %61 = vector.load %arg4[%c0_17, %c0_18] : memref<1x128xf32, #tpu.memory_space<vmem>>, vector<1x128xf32>
    %62 = vector.broadcast %61 : vector<1x128xf32> to vector<32x128xf32>
    %63 = arith.addf %60, %62 : vector<32x128xf32>
    %64 = math.tanh %63 : vector<32x128xf32>
    %cst_19 = arith.constant 1.000000e-01 : f32
    %65 = vector.broadcast %cst_19 : f32 to vector<32x128xf32>
    %66 = arith.mulf %7, %65 : vector<32x128xf32>
    %67 = arith.addf %64, %66 : vector<32x128xf32>
    %c0_20 = arith.constant 0 : index
    %c0_21 = arith.constant 0 : index
    %68 = vector.load %arg5[%c0_20, %c0_21] : memref<32x32xf32, #tpu.memory_space<vmem>>, vector<32x32xf32>
    %cst_22 = arith.constant dense<0.000000e+00> : vector<32x128xf32>
    %69 = tpu.matmul %68, %67, %cst_22 {dimension_numbers = #tpu.dot_dimension_numbers<[1], [0], [0], [1], [0, 0, 1, 1], [], []>} : vector<32x32xf32>, vector<32x128xf32>, vector<32x128xf32> -> vector<32x128xf32>
    %cst_23 = arith.constant -1.000000e+01 : f32
    %cst_24 = arith.constant 1.000000e+01 : f32
    %70 = vector.broadcast %cst_23 : f32 to vector<32x128xf32>
    %71 = arith.maximumf %70, %69 : vector<32x128xf32>
    %72 = vector.broadcast %cst_24 : f32 to vector<32x128xf32>
    %73 = arith.minimumf %72, %71 : vector<32x128xf32>
    %cst_25 = arith.constant dense<0.000000e+00> : vector<32xf32>
    %74 = vector.multi_reduction <add>, %73, %cst_25 [1] : vector<32x128xf32> to vector<32xf32>
    %75 = vector.shape_cast %74 : vector<32xf32> to vector<32x1xf32>
    %cst_26 = arith.constant 1.280000e+02 : f32
    %76 = vector.broadcast %cst_26 : f32 to vector<32x1xf32>
    %77 = arith.divf %75, %76 : vector<32x1xf32>
    %78 = vector.broadcast %77 : vector<32x1xf32> to vector<32x128xf32>
    %79 = arith.subf %73, %78 : vector<32x128xf32>
    %80 = arith.mulf %79, %79 : vector<32x128xf32>
    %cst_27 = arith.constant dense<0.000000e+00> : vector<32xf32>
    %81 = vector.multi_reduction <add>, %80, %cst_27 [1] : vector<32x128xf32> to vector<32xf32>
    %82 = vector.shape_cast %81 : vector<32xf32> to vector<32x1xf32>
    %cst_28 = arith.constant 1.280000e+02 : f32
    %83 = vector.broadcast %cst_28 : f32 to vector<32x1xf32>
    %84 = arith.divf %82, %83 : vector<32x1xf32>
    %85 = vector.broadcast %77 : vector<32x1xf32> to vector<32x128xf32>
    %86 = arith.subf %73, %85 : vector<32x128xf32>
    %cst_29 = arith.constant 9.99999974E-6 : f32
    %87 = vector.broadcast %cst_29 : f32 to vector<32x1xf32>
    %88 = arith.addf %84, %87 : vector<32x1xf32>
    %89 = math.rsqrt %88 : vector<32x1xf32>
    %90 = vector.broadcast %89 : vector<32x1xf32> to vector<32x128xf32>
    %91 = arith.mulf %86, %90 : vector<32x128xf32>
    %c0_30 = arith.constant 0 : index
    %c0_31 = arith.constant 0 : index
    %92 = vector.load %arg7[%c0_30, %c0_31] : memref<1x128xf32, #tpu.memory_space<vmem>>, vector<1x128xf32>
    %93 = vector.broadcast %92 : vector<1x128xf32> to vector<32x128xf32>
    %94 = arith.mulf %91, %93 : vector<32x128xf32>
    %c0_32 = arith.constant 0 : index
    %c0_33 = arith.constant 0 : index
    %95 = vector.load %arg8[%c0_32, %c0_33] : memref<1x128xf32, #tpu.memory_space<vmem>>, vector<1x128xf32>
    %96 = vector.broadcast %95 : vector<1x128xf32> to vector<32x128xf32>
    %97 = arith.addf %94, %96 : vector<32x128xf32>
    %c0_34 = arith.constant 0 : index
    %c0_35 = arith.constant 0 : index
    %98 = vector.load %arg6[%c0_34, %c0_35] : memref<32x32xf32, #tpu.memory_space<vmem>>, vector<32x32xf32>
    %cst_36 = arith.constant dense<0.000000e+00> : vector<32x128xf32>
    %99 = tpu.matmul %98, %97, %cst_36 {dimension_numbers = #tpu.dot_dimension_numbers<[1], [0], [0], [1], [0, 0, 1, 1], [], []>} : vector<32x32xf32>, vector<32x128xf32>, vector<32x128xf32> -> vector<32x128xf32>
    %c0_37 = arith.constant 0 : index
    %c0_38 = arith.constant 0 : index
    %100 = vector.load %arg9[%c0_37, %c0_38] : memref<32x128xf32, #tpu.memory_space<vmem>>, vector<32x128xf32>
    tpu.vector_store %arg9[%c0_37, %c0_38], %99 {strides = array<i32>} : memref<32x128xf32, #tpu.memory_space<vmem>>, vector<32x128xf32>,
    return
  }
  func.func @transform_0(%arg0: i32) -> (i32, i32) {
    %c0_i32 = arith.constant 0 : i32
    %c0_i32_0 = arith.constant 0 : i32
    return %arg0, %c0_i32 : i32, i32
  }
  func.func @transform_1(%arg0: i32) -> (i32, i32) {
    %c0_i32 = arith.constant 0 : i32
    %c0_i32_0 = arith.constant 0 : i32
    %c0_i32_1 = arith.constant 0 : i32
    return %c0_i32, %c0_i32_0 : i32, i32
  }
  func.func @transform_2(%arg0: i32) -> (i32, i32) {
    %c0_i32 = arith.constant 0 : i32
    %c0_i32_0 = arith.constant 0 : i32
    %c0_i32_1 = arith.constant 0 : i32
    return %c0_i32, %c0_i32_0 : i32, i32
  }
  func.func @transform_3(%arg0: i32) -> (i32, i32) {
    %c0_i32 = arith.constant 0 : i32
    %c0_i32_0 = arith.constant 0 : i32
    %c0_i32_1 = arith.constant 0 : i32
    return %c0_i32, %c0_i32_0 : i32, i32
  }
  func.func @transform_4(%arg0: i32) -> (i32, i32) {
    %c0_i32 = arith.constant 0 : i32
    %c0_i32_0 = arith.constant 0 : i32
    %c0_i32_1 = arith.constant 0 : i32
    return %c0_i32, %c0_i32_0 : i32, i32
  }
  func.func @transform_5(%arg0: i32) -> (i32, i32) {
    %c0_i32 = arith.constant 0 : i32
    %c0_i32_0 = arith.constant 0 : i32
    %c0_i32_1 = arith.constant 0 : i32
    return %c0_i32, %c0_i32_0 : i32, i32
  }
  func.func @transform_6(%arg0: i32) -> (i32, i32) {
    %c0_i32 = arith.constant 0 : i32
    %c0_i32_0 = arith.constant 0 : i32
    %c0_i32_1 = arith.constant 0 : i32
    return %c0_i32, %c0_i32_0 : i32, i32
  }
  func.func @transform_7(%arg0: i32) -> (i32, i32) {
    %c0_i32 = arith.constant 0 : i32
    %c0_i32_0 = arith.constant 0 : i32
    %c0_i32_1 = arith.constant 0 : i32
    return %c0_i32, %c0_i32_0 : i32, i32
  }
  func.func @transform_8(%arg0: i32) -> (i32, i32) {
    %c0_i32 = arith.constant 0 : i32
    %c0_i32_0 = arith.constant 0 : i32
    return %arg0, %c0_i32 : i32, i32
  }
}

</mosaic_0001>

<llo_original>
// kernel: tpu_custom_call.1
$region0: #{tpu_custom_call.1}
  #allocation0 [shape = 'u32[]', space=smem, size = 0x4, offset = 0x4, fixed_abs, tag = 'smem constant byte address 0x4 - core index']
  #allocation1 [shape = 'u32[144,128]{1,0:T(1,128)}', space=vmem, size = 0x12000, scoped, tag = 'internal scratch']
  %s0 = inlined_call_operand.hbm [shape: f32[32,128], index: 0, kind: input, shape index: {}]
  %s1 = inlined_call_operand.vmem [shape: f32[1,128], index: 1, kind: input, shape index: {}]
  %s2 = inlined_call_operand.hbm [shape: bf16[640,128], index: 2, kind: input, shape index: {}]
  %s3 = inlined_call_operand.vmem [shape: f32[1,128], index: 3, kind: input, shape index: {}]
  %s4 = inlined_call_operand.hbm [shape: f32[32,32], index: 4, kind: input, shape index: {}]
  %s5 = inlined_call_operand.hbm [shape: f32[32,32], index: 5, kind: input, shape index: {}]
  %s6 = inlined_call_operand.vmem [shape: f32[1,128], index: 6, kind: input, shape index: {}]
  %s7 = inlined_call_operand.vmem [shape: f32[1,128], index: 7, kind: input, shape index: {}]
  %s8 = inlined_call_operand.hbm [shape: f32[32,128], index: 8, kind: output, shape index: {}]
  %s9 = sld [smem:[#allocation0]]
  $region58: #{tpu_custom_call.1} parent=0
    _
  %s11 = ssub.s32 1, %s9
  %s12 = scalar_select 0, %s11, %s9
  $region1: #{tpu_custom_call.1} parent=0
    #allocation2 [shape = 'u8[16384]{0}', space=vmem, size = 0x4000, scoped, tag = 'input window, operand 0, single buffered']
    #allocation3 [shape = 's32[1]{0}', space=sflag, size = 0x4, scoped, tag = 'scoped memory for tpu_custom_call.1']
    #allocation4 [shape = 's32[1]{0}', space=sflag, size = 0x4, scoped, tag = 'scoped memory for tpu_custom_call.1']
    #allocation5 [shape = 'u8[163840]{0}', space=vmem, size = 0x28000, scoped, tag = 'input window, operand 2, single buffered']
    #allocation6 [shape = 's32[1]{0}', space=sflag, size = 0x4, scoped, tag = 'scoped memory for tpu_custom_call.1']
    #allocation7 [shape = 'u8[16384]{0}', space=vmem, size = 0x4000, scoped, tag = 'input window, operand 4, single buffered']
    #allocation8 [shape = 'u8[16384]{0}', space=vmem, size = 0x4000, scoped, tag = 'input window, operand 5, single buffered']
    #allocation9 [shape = 's32[1]{0}', space=sflag, size = 0x4, scoped, tag = 'scoped memory for tpu_custom_call.1']
    #allocation10 [shape = 'u8[16384]{0}', space=vmem, size = 0x4000, scoped, tag = 'output window, operand 0, single buffered']
    %13 = vsyncpa [#allocation3], 0
    %14 = vsyncpa [#allocation6], 0
    %15 = vsyncpa [#allocation9], 0
    %16 = vsyncpa [#allocation4], 0
    // Predicated region
    $region2: #{tpu_custom_call.1} parent=1 // pred_check
      _
    $region3: #{tpu_custom_call.1} parent=1 // pred_check_branch
      %18 = sbr.rel (0) target = $region5
    $region4: #{tpu_custom_call.1} parent=1 // pred_region
      %s20 = ssub.s32 512, 512
      %21 = vsyncadd [#allocation3], %s20
      %s22 = sshll.u32 [#allocation2], 4
      %s23 = int_to_ptr.vmem [resolvable:$true] %s22
      %28 = dma.hbm_to_vmem [thread:$0]  %s0, 512, %s23, [#allocation3], 128, 128, 8
    $region5: #{tpu_custom_call.1} parent=1 // pred_fallthru
      _
    // Predicated region
    $region6: #{tpu_custom_call.1} parent=1 // pred_check
      _
    $region7: #{tpu_custom_call.1} parent=1 // pred_check_branch
      %30 = sbr.rel (0) target = $region9
    $region8: #{tpu_custom_call.1} parent=1 // pred_region
      _
    $region9: #{tpu_custom_call.1} parent=1 // pred_fallthru
      _
    // Predicated region
    $region10: #{tpu_custom_call.1} parent=1 // pred_check
      _
    $region11: #{tpu_custom_call.1} parent=1 // pred_check_branch
      %32 = sbr.rel (0) target = $region13
    $region12: #{tpu_custom_call.1} parent=1 // pred_region
      %s34 = ssub.s32 5120, 5120
      %35 = vsyncadd [#allocation6], %s34
      %s36 = sshll.u32 [#allocation5], 4
      %s37 = int_to_ptr.vmem [resolvable:$true] %s36
      %42 = dma.hbm_to_vmem [thread:$0]  %s2, 5120, %s37, [#allocation6], 64, 64, 4
    $region13: #{tpu_custom_call.1} parent=1 // pred_fallthru
      _
    // Predicated region
    $region14: #{tpu_custom_call.1} parent=1 // pred_check
      _
    $region15: #{tpu_custom_call.1} parent=1 // pred_check_branch
      %44 = sbr.rel (0) target = $region17
    $region16: #{tpu_custom_call.1} parent=1 // pred_region
      _
    $region17: #{tpu_custom_call.1} parent=1 // pred_fallthru
      _
    // Predicated region
    $region18: #{tpu_custom_call.1} parent=1 // pred_check
      _
    $region19: #{tpu_custom_call.1} parent=1 // pred_check_branch
      %46 = sbr.rel (0) target = $region21
    $region20: #{tpu_custom_call.1} parent=1 // pred_region
      %s48 = ssub.s32 512, 512
      %49 = vsyncadd [#allocation6], %s48
      %s50 = sshll.u32 [#allocation7], 4
      %s51 = int_to_ptr.vmem [resolvable:$true] %s50
      %56 = dma.hbm_to_vmem [thread:$0]  %s4, 512, %s51, [#allocation6], 128, 128, 8
    $region21: #{tpu_custom_call.1} parent=1 // pred_fallthru
      _
    // Predicated region
    $region22: #{tpu_custom_call.1} parent=1 // pred_check
      _
    $region23: #{tpu_custom_call.1} parent=1 // pred_check_branch
      %58 = sbr.rel (0) target = $region25
    $region24: #{tpu_custom_call.1} parent=1 // pred_region
      %s60 = ssub.s32 512, 512
      %61 = vsyncadd [#allocation9], %s60
      %s62 = sshll.u32 [#allocation8], 4
      %s63 = int_to_ptr.vmem [resolvable:$true] %s62
      %68 = dma.hbm_to_vmem [thread:$0]  %s5, 512, %s63, [#allocation9], 128, 128, 8
    $region25: #{tpu_custom_call.1} parent=1 // pred_fallthru
      _
    // Predicated region
    $region26: #{tpu_custom_call.1} parent=1 // pred_check
      _
    $region27: #{tpu_custom_call.1} parent=1 // pred_check_branch
      %70 = sbr.rel (0) target = $region29
    $region28: #{tpu_custom_call.1} parent=1 // pred_region
      _
    $region29: #{tpu_custom_call.1} parent=1 // pred_fallthru
      _
    // Predicated region
    $region30: #{tpu_custom_call.1} parent=1 // pred_check
      _
    $region31: #{tpu_custom_call.1} parent=1 // pred_check_branch
      %72 = sbr.rel (0) target = $region33
    $region32: #{tpu_custom_call.1} parent=1 // pred_region
      _
    $region33: #{tpu_custom_call.1} parent=1 // pred_fallthru
      _
    // Predicated region
    $region34: #{tpu_custom_call.1} parent=1 // pred_check
      _
    $region35: #{tpu_custom_call.1} parent=1 // pred_check_branch
      %74 = sbr.rel (0) target = $region37
    $region36: #{tpu_custom_call.1} parent=1 // pred_region
      %75 = dma.done [#allocation3], 512
    $region37: #{tpu_custom_call.1} parent=1 // pred_fallthru
      _
    // Predicated region
    $region38: #{tpu_custom_call.1} parent=1 // pred_check
      _
    $region39: #{tpu_custom_call.1} parent=1 // pred_check_branch
      %77 = sbr.rel (0) target = $region41
    $region40: #{tpu_custom_call.1} parent=1 // pred_region
      %78 = dma.done [#allocation6], 5120
    $region41: #{tpu_custom_call.1} parent=1 // pred_fallthru
      _
    // Predicated region
    $region42: #{tpu_custom_call.1} parent=1 // pred_check
      _
    $region43: #{tpu_custom_call.1} parent=1 // pred_check_branch
      %80 = sbr.rel (0) target = $region45
    $region44: #{tpu_custom_call.1} parent=1 // pred_region
      %81 = dma.done [#allocation6], 512
    $region45: #{tpu_custom_call.1} parent=1 // pred_fallthru
      _
    // Predicated region
    $region46: #{tpu_custom_call.1} parent=1 // pred_check
      _
    $region47: #{tpu_custom_call.1} parent=1 // pred_check_branch
      %83 = sbr.rel (0) target = $region49
    $region48: #{tpu_custom_call.1} parent=1 // pred_region
      %84 = dma.done [#allocation9], 512
    $region49: #{tpu_custom_call.1} parent=1 // pred_fallthru
      _
    %v86 = vld [vmem:[#allocation2] sm:$0xff]
    %v87 = vld [vmem:[#allocation2 + $0x8] sm:$0xff]
    %v88 = vld [vmem:[#allocation2 + $0x10] sm:$0xff]
    %v89 = vld [vmem:[#allocation2 + $0x18] sm:$0xff]
    %v90 = vld [vmem:[%s1] sm:$0x1]
    %v92 = vlaneseq
    %v93 = vshrl.u32 %v92, 7
    %v94 = vsub.s32 0, %v93
    %v95 = vrot.slane %v90, %v94
    %v97 = vmul.f32 %v86, %v95
    %v98 = vmul.f32 %v87, %v95
    %v99 = vmul.f32 %v88, %v95
    %v100 = vmul.f32 %v89, %v95
    %v101 = vmax.f32 %v97, -10.0
    %v102 = vmax.f32 %v98, -10.0
    %v103 = vmax.f32 %v99, -10.0
    %v104 = vmax.f32 %v100, -10.0
    %v105 = vmin.f32 %v101, 10.0
    %v106 = vmin.f32 %v102, 10.0
    %v107 = vmin.f32 %v103, 10.0
    %v108 = vmin.f32 %v104, 10.0
    %v109 = vlaneseq
    %v110 = vshrl.u32 %v109, 7
    %v111 = vadd.s32 %v110, 8
    %v112 = vadd.s32 %v110, 16
    %v113 = vadd.s32 %v110, 24
    %vm114 = vcmp.lt.s32.totalorder %v110, 0
    %v115 = vsub.s32 0, %v110
    %v116 = vsel %vm114, %v115, %v110
    %v117 = vshrl.u32 %v116, 4
    %v118 = vand.u32 %v116, 15
    %v119 = vsub.s32 0, %v118
    %v120 = vsel %vm114, %v119, %v118
    %vm121 = vcmp.lt.s32.totalorder %v111, 0
    %v122 = vsub.s32 0, %v111
    %v123 = vsel %vm121, %v122, %v111
    %v124 = vshrl.u32 %v123, 4
    %v125 = vand.u32 %v123, 15
    %v126 = vsub.s32 0, %v125
    %v127 = vsel %vm121, %v126, %v125
    %vm128 = vcmp.lt.s32.totalorder %v112, 0
    %v129 = vsub.s32 0, %v112
    %v130 = vsel %vm128, %v129, %v112
    %v131 = vshrl.u32 %v130, 4
    %v132 = vand.u32 %v130, 15
    %v133 = vsub.s32 0, %v132
    %v134 = vsel %vm128, %v133, %v132
    %vm135 = vcmp.lt.s32.totalorder %v113, 0
    %v136 = vsub.s32 0, %v113
    %v137 = vsel %vm135, %v136, %v113
    %v138 = vshrl.u32 %v137, 4
    %v139 = vand.u32 %v137, 15
    %v140 = vsub.s32 0, %v139
    %v141 = vsel %vm135, %v140, %v139
    %vm142 = vcmp.ne.s32.totalorder %v120, 0
    %vm143 = vcmp.ne.s32.totalorder %v127, 0
    %vm144 = vcmp.ne.s32.totalorder %v134, 0
    %vm145 = vcmp.ne.s32.totalorder %v141, 0
    %vm146 = vcmp.lt.s32.totalorder %v120, 0
    %vm147 = vcmp.lt.s32.totalorder %v127, 0
    %vm148 = vcmp.lt.s32.totalorder %v134, 0
    %vm149 = vcmp.lt.s32.totalorder %v141, 0
    %vm150 = vmand %vm146, %vm142
    %vm151 = vmand %vm147, %vm143
    %vm152 = vmand %vm148, %vm144
    %vm153 = vmand %vm149, %vm145
    %v154 = vadd.s32 %v120, 16
    %v155 = vadd.s32 %v127, 16
    %v156 = vadd.s32 %v134, 16
    %v157 = vadd.s32 %v141, 16
    %v158 = vsel %vm150, %v154, %v120
    %v159 = vsel %vm151, %v155, %v127
    %v160 = vsel %vm152, %v156, %v134
    %v161 = vsel %vm153, %v157, %v141
    %v162 = vrot.slane %v105, 6
    %v163 = vrot.slane %v106, 6
    %v164 = vrot.slane %v107, 6
    %v165 = vrot.slane %v108, 6
    %vm166 = vcmp.lt.s32.totalorder %v110, 2
    %v167 = vsel %vm166, %v164, %v165
    %v168 = vsel %vm166, %v163, %v164
    %v169 = vsel %vm166, %v162, %v163
    %v170 = vsel %vm166, %v165, %v162
    %vm171 = vcmp.ge.s32.totalorder %v158, 2
    %vm172 = vcmp.ge.s32.totalorder %v159, 2
    %vm173 = vcmp.ge.s32.totalorder %v160, 2
    %vm174 = vcmp.ge.s32.totalorder %v161, 2
    %v175 = vsel %vm171, 1, 0
    %v176 = vsel %vm172, 1, 0
    %v177 = vsel %vm173, 1, 0
    %v178 = vsel %vm174, 1, 0
    %vm179 = vcmp.eq.s32.totalorder %v175, 1
    %vm180 = vcmp.eq.s32.totalorder %v176, 1
    %vm181 = vcmp.eq.s32.totalorder %v177, 1
    %vm182 = vcmp.eq.s32.totalorder %v178, 1
    %v183 = vsel %vm179, %v170, 0.0
    %v184 = vsel %vm180, %v169, 0.0
    %v185 = vsel %vm181, %v168, 0.0
    %v186 = vsel %vm182, %v167, 0.0
    %v187 = vpack.c.bf16 %v184, %v183
    %v188 = vpack.c.bf16 %v186, %v185
    %v189 = vrot.slane %v105, 7
    %v190 = vrot.slane %v106, 7
    %v191 = vrot.slane %v107, 7
    %v192 = vrot.slane %v108, 7
    %vm193 = vcmp.lt.s32.totalorder %v110, 1
    %v194 = vsel %vm193, %v191, %v192
    %v195 = vsel %vm193, %v190, %v191
    %v196 = vsel %vm193, %v189, %v190
    %v197 = vsel %vm193, %v192, %v189
    %vm198 = vcmp.ge.s32.totalorder %v158, 1
    %vm199 = vcmp.ge.s32.totalorder %v159, 1
    %vm200 = vcmp.ge.s32.totalorder %v160, 1
    %vm201 = vcmp.ge.s32.totalorder %v161, 1
    %v202 = vsel %vm198, 1, 0
    %v203 = vsel %vm199, 1, 0
    %v204 = vsel %vm200, 1, 0
    %v205 = vsel %vm201, 1, 0
    %vm206 = vcmp.eq.s32.totalorder %v202, 1
    %vm207 = vcmp.eq.s32.totalorder %v203, 1
    %vm208 = vcmp.eq.s32.totalorder %v204, 1
    %vm209 = vcmp.eq.s32.totalorder %v205, 1
    %v210 = vsel %vm206, %v197, 0.0
    %v211 = vsel %vm207, %v196, 0.0
    %v212 = vsel %vm208, %v195, 0.0
    %v213 = vsel %vm209, %v194, 0.0
    %v214 = vpack.c.bf16 %v211, %v210
    %v215 = vpack.c.bf16 %v213, %v212
    %v216 = vpack.c.bf16 %v106, %v105
    %v217 = vpack.c.bf16 %v108, %v107
    %v218 = vrot.slane %v105, 1
    %v219 = vrot.slane %v106, 1
    %v220 = vrot.slane %v107, 1
    %v221 = vrot.slane %v108, 1
    %vm222 = vcmp.lt.s32.totalorder %v110, 7
    %v223 = vsel %vm222, %v220, %v221
    %v224 = vsel %vm222, %v219, %v220
    %v225 = vsel %vm222, %v218, %v219
    %v226 = vsel %vm222, %v221, %v218
    %vm227 = vcmp.lt.s32.totalorder %v158, 15
    %vm228 = vcmp.lt.s32.totalorder %v159, 15
    %vm229 = vcmp.lt.s32.totalorder %v160, 15
    %vm230 = vcmp.lt.s32.totalorder %v161, 15
    %v231 = vsel %vm227, 1, 0
    %v232 = vsel %vm228, 1, 0
    %v233 = vsel %vm229, 1, 0
    %v234 = vsel %vm230, 1, 0
    %vm235 = vcmp.eq.s32.totalorder %v231, 1
    %vm236 = vcmp.eq.s32.totalorder %v232, 1
    %vm237 = vcmp.eq.s32.totalorder %v233, 1
    %vm238 = vcmp.eq.s32.totalorder %v234, 1
    %v239 = vsel %vm235, %v225, 0.0
    %v240 = vsel %vm236, %v224, 0.0
    %v241 = vsel %vm237, %v223, 0.0
    %v242 = vsel %vm238, %v226, 0.0
    %v243 = vpack.c.bf16 %v240, %v239
    %v244 = vpack.c.bf16 %v242, %v241
    %v245 = vrot.slane %v105, 2
    %v246 = vrot.slane %v106, 2
    %v247 = vrot.slane %v107, 2
    %v248 = vrot.slane %v108, 2
    %vm249 = vcmp.lt.s32.totalorder %v110, 6
    %v250 = vsel %vm249, %v247, %v248
    %v251 = vsel %vm249, %v246, %v247
    %v252 = vsel %vm249, %v245, %v246
    %v253 = vsel %vm249, %v248, %v245
    %vm254 = vcmp.lt.s32.totalorder %v158, 14
    %vm255 = vcmp.lt.s32.totalorder %v159, 14
    %vm256 = vcmp.lt.s32.totalorder %v160, 14
    %vm257 = vcmp.lt.s32.totalorder %v161, 14
    %v258 = vsel %vm254, 1, 0
    %v259 = vsel %vm255, 1, 0
    %v260 = vsel %vm256, 1, 0
    %v261 = vsel %vm257, 1, 0
    %vm262 = vcmp.eq.s32.totalorder %v258, 1
    %vm263 = vcmp.eq.s32.totalorder %v259, 1
    %vm264 = vcmp.eq.s32.totalorder %v260, 1
    %vm265 = vcmp.eq.s32.totalorder %v261, 1
    %v266 = vsel %vm262, %v252, 0.0
    %v267 = vsel %vm263, %v251, 0.0
    %v268 = vsel %vm264, %v250, 0.0
    %v269 = vsel %vm265, %v253, 0.0
    %v270 = vpack.c.bf16 %v267, %v266
    %v271 = vpack.c.bf16 %v269, %v268
    %v272 = vld [vmem:[#allocation5] sm:$0xf]
    %v273 = vld [vmem:[#allocation5 + $0x4] sm:$0xf]
    %v274 = vld [vmem:[#allocation5 + $0x8] sm:$0xf]
    %v275 = vld [vmem:[#allocation5 + $0xc] sm:$0xf]
    %v276 = vld [vmem:[#allocation5 + $0x10] sm:$0xf]
    %v277 = vld [vmem:[#allocation5 + $0x14] sm:$0xf]
    %v278 = vld [vmem:[#allocation5 + $0x18] sm:$0xf]
    %v279 = vld [vmem:[#allocation5 + $0x1c] sm:$0xf]
    %v280 = vld [vmem:[#allocation5 + $0x20] sm:$0xf]
    %v281 = vld [vmem:[#allocation5 + $0x24] sm:$0xf]
    %v282 = vld [vmem:[#allocation5 + $0x28] sm:$0xf]
    %v283 = vld [vmem:[#allocation5 + $0x2c] sm:$0xf]
    %v284 = vld [vmem:[#allocation5 + $0x30] sm:$0xf]
    %v285 = vld [vmem:[#allocation5 + $0x34] sm:$0xf]
    %v286 = vld [vmem:[#allocation5 + $0x38] sm:$0xf]
    %v287 = vld [vmem:[#allocation5 + $0x3c] sm:$0xf]
    %v288 = vld [vmem:[#allocation5 + $0x40] sm:$0xf]
    %v289 = vld [vmem:[#allocation5 + $0x44] sm:$0xf]
    %v290 = vld [vmem:[#allocation5 + $0x48] sm:$0xf]
    %v291 = vld [vmem:[#allocation5 + $0x4c] sm:$0xf]
    %v292 = vld [vmem:[#allocation5 + $0x50] sm:$0xf]
    %v293 = vld [vmem:[#allocation5 + $0x54] sm:$0xf]
    %v294 = vld [vmem:[#allocation5 + $0x58] sm:$0xf]
    %v295 = vld [vmem:[#allocation5 + $0x5c] sm:$0xf]
    %v296 = vld [vmem:[#allocation5 + $0x60] sm:$0xf]
    %v297 = vld [vmem:[#allocation5 + $0x64] sm:$0xf]
    %v298 = vld [vmem:[#allocation5 + $0x68] sm:$0xf]
    %v299 = vld [vmem:[#allocation5 + $0x6c] sm:$0xf]
    %v300 = vld [vmem:[#allocation5 + $0x70] sm:$0xf]
    %v301 = vld [vmem:[#allocation5 + $0x74] sm:$0xf]
    %v302 = vld [vmem:[#allocation5 + $0x78] sm:$0xf]
    %v303 = vld [vmem:[#allocation5 + $0x7c] sm:$0xf]
    %v304 = vld [vmem:[#allocation5 + $0x80] sm:$0xf]
    %v305 = vld [vmem:[#allocation5 + $0x84] sm:$0xf]
    %v306 = vld [vmem:[#allocation5 + $0x88] sm:$0xf]
    %v307 = vld [vmem:[#allocation5 + $0x8c] sm:$0xf]
    %v308 = vld [vmem:[#allocation5 + $0x90] sm:$0xf]
    %v309 = vld [vmem:[#allocation5 + $0x94] sm:$0xf]
    %v310 = vld [vmem:[#allocation5 + $0x98] sm:$0xf]
    %v311 = vld [vmem:[#allocation5 + $0x9c] sm:$0xf]
    %v312 = vld [vmem:[#allocation5 + $0xa0] sm:$0xf]
    %v313 = vld [vmem:[#allocation5 + $0xa4] sm:$0xf]
    %v314 = vld [vmem:[#allocation5 + $0xa8] sm:$0xf]
    %v315 = vld [vmem:[#allocation5 + $0xac] sm:$0xf]
    %v316 = vld [vmem:[#allocation5 + $0xb0] sm:$0xf]
    %v317 = vld [vmem:[#allocation5 + $0xb4] sm:$0xf]
    %v318 = vld [vmem:[#allocation5 + $0xb8] sm:$0xf]
    %v319 = vld [vmem:[#allocation5 + $0xbc] sm:$0xf]
    %v320 = vld [vmem:[#allocation5 + $0xc0] sm:$0xf]
    %v321 = vld [vmem:[#allocation5 + $0xc4] sm:$0xf]
    %v322 = vld [vmem:[#allocation5 + $0xc8] sm:$0xf]
    %v323 = vld [vmem:[#allocation5 + $0xcc] sm:$0xf]
    %v324 = vld [vmem:[#allocation5 + $0xd0] sm:$0xf]
    %v325 = vld [vmem:[#allocation5 + $0xd4] sm:$0xf]
    %v326 = vld [vmem:[#allocation5 + $0xd8] sm:$0xf]
    %v327 = vld [vmem:[#allocation5 + $0xdc] sm:$0xf]
    %v328 = vld [vmem:[#allocation5 + $0xe0] sm:$0xf]
    %v329 = vld [vmem:[#allocation5 + $0xe4] sm:$0xf]
    %v330 = vld [vmem:[#allocation5 + $0xe8] sm:$0xf]
    %v331 = vld [vmem:[#allocation5 + $0xec] sm:$0xf]
    %v332 = vld [vmem:[#allocation5 + $0xf0] sm:$0xf]
    %v333 = vld [vmem:[#allocation5 + $0xf4] sm:$0xf]
    %v334 = vld [vmem:[#allocation5 + $0xf8] sm:$0xf]
    %v335 = vld [vmem:[#allocation5 + $0xfc] sm:$0xf]
    %v336 = vld [vmem:[#allocation5 + $0x100] sm:$0xf]
    %v337 = vld [vmem:[#allocation5 + $0x104] sm:$0xf]
    %v338 = vld [vmem:[#allocation5 + $0x108] sm:$0xf]
    %v339 = vld [vmem:[#allocation5 + $0x10c] sm:$0xf]
    %v340 = vld [vmem:[#allocation5 + $0x110] sm:$0xf]
    %v341 = vld [vmem:[#allocation5 + $0x114] sm:$0xf]
    %v342 = vld [vmem:[#allocation5 + $0x118] sm:$0xf]
    %v343 = vld [vmem:[#allocation5 + $0x11c] sm:$0xf]
    %v344 = vld [vmem:[#allocation5 + $0x120] sm:$0xf]
    %v345 = vld [vmem:[#allocation5 + $0x124] sm:$0xf]
    %v346 = vld [vmem:[#allocation5 + $0x128] sm:$0xf]
    %v347 = vld [vmem:[#allocation5 + $0x12c] sm:$0xf]
    %v348 = vld [vmem:[#allocation5 + $0x130] sm:$0xf]
    %v349 = vld [vmem:[#allocation5 + $0x134] sm:$0xf]
    %v350 = vld [vmem:[#allocation5 + $0x138] sm:$0xf]
    %v351 = vld [vmem:[#allocation5 + $0x13c] sm:$0xf]
    %v352 = vld [vmem:[%s3] sm:$0x1]
    %v354 = vlaneseq
    %v355 = vshrl.u32 %v354, 7
    %v356 = vsub.s32 0, %v355
    %v357 = vrot.slane %v352, %v356
    %v439 = vunpack.c.l.b16 %v272
    %v440 = vunpack.c.l.b16 %v273
    %v441 = vunpack.c.l.b16 %v274
    %v442 = vunpack.c.l.b16 %v275
    %v443 = vunpack.c.l.b16 %v276
    %v444 = vunpack.c.l.b16 %v277
    %v445 = vunpack.c.l.b16 %v278
    %v446 = vunpack.c.l.b16 %v279
    %v447 = vunpack.c.l.b16 %v280
    %v448 = vunpack.c.l.b16 %v281
    %v449 = vunpack.c.l.b16 %v282
    %v450 = vunpack.c.l.b16 %v283
    %v451 = vunpack.c.l.b16 %v284
    %v452 = vunpack.c.l.b16 %v285
    %v453 = vunpack.c.l.b16 %v286
    %v454 = vunpack.c.l.b16 %v287
    %v455 = vunpack.c.l.b16 %v288
    %v456 = vunpack.c.l.b16 %v289
    %v457 = vunpack.c.l.b16 %v290
    %v458 = vunpack.c.l.b16 %v291
    %v459 = vunpack.c.l.b16 %v292
    %v460 = vunpack.c.l.b16 %v293
    %v461 = vunpack.c.l.b16 %v294
    %v462 = vunpack.c.l.b16 %v295
    %v463 = vunpack.c.l.b16 %v296
    %v464 = vunpack.c.l.b16 %v297
    %v465 = vunpack.c.l.b16 %v298
    %v466 = vunpack.c.l.b16 %v299
    %v467 = vunpack.c.l.b16 %v300
    %v468 = vunpack.c.l.b16 %v301
    %v469 = vunpack.c.l.b16 %v302
    %v470 = vunpack.c.l.b16 %v303
    %v471 = vunpack.c.l.b16 %v304
    %v472 = vunpack.c.l.b16 %v305
    %v473 = vunpack.c.l.b16 %v306
    %v474 = vunpack.c.l.b16 %v307
    %v475 = vunpack.c.l.b16 %v308
    %v476 = vunpack.c.l.b16 %v309
    %v477 = vunpack.c.l.b16 %v310
    %v478 = vunpack.c.l.b16 %v311
    %v479 = vunpack.c.l.b16 %v312
    %v480 = vunpack.c.l.b16 %v313
    %v481 = vunpack.c.l.b16 %v314
    %v482 = vunpack.c.l.b16 %v315
    %v483 = vunpack.c.l.b16 %v316
    %v484 = vunpack.c.l.b16 %v317
    %v485 = vunpack.c.l.b16 %v318
    %v486 = vunpack.c.l.b16 %v319
    %v487 = vunpack.c.l.b16 %v320
    %v488 = vunpack.c.l.b16 %v321
    %v489 = vunpack.c.l.b16 %v322
    %v490 = vunpack.c.l.b16 %v323
    %v491 = vunpack.c.l.b16 %v324
    %v492 = vunpack.c.l.b16 %v325
    %v493 = vunpack.c.l.b16 %v326
    %v494 = vunpack.c.l.b16 %v327
    %v495 = vunpack.c.l.b16 %v328
    %v496 = vunpack.c.l.b16 %v329
    %v497 = vunpack.c.l.b16 %v330
    %v498 = vunpack.c.l.b16 %v331
    %v499 = vunpack.c.l.b16 %v332
    %v500 = vunpack.c.l.b16 %v333
    %v501 = vunpack.c.l.b16 %v334
    %v502 = vunpack.c.l.b16 %v335
    %v503 = vunpack.c.l.b16 %v336
    %v504 = vunpack.c.l.b16 %v337
    %v505 = vunpack.c.l.b16 %v338
    %v506 = vunpack.c.l.b16 %v339
    %v507 = vunpack.c.l.b16 %v340
    %v508 = vunpack.c.l.b16 %v341
    %v509 = vunpack.c.l.b16 %v342
    %v510 = vunpack.c.l.b16 %v343
    %v511 = vunpack.c.l.b16 %v344
    %v512 = vunpack.c.l.b16 %v345
    %v513 = vunpack.c.l.b16 %v346
    %v514 = vunpack.c.l.b16 %v347
    %v515 = vunpack.c.l.b16 %v348
    %v516 = vunpack.c.l.b16 %v349
    %v517 = vunpack.c.l.b16 %v350
    %v518 = vunpack.c.l.b16 %v351
    %v519 = vpack.c.b16 %v440, %v439
    %v520 = vpack.c.b16 %v442, %v441
    %v521 = vpack.c.b16 %v444, %v443
    %v522 = vpack.c.b16 %v446, %v445
    %v523 = vpack.c.b16 %v448, %v447
    %v524 = vpack.c.b16 %v450, %v449
    %v525 = vpack.c.b16 %v452, %v451
    %v526 = vpack.c.b16 %v454, %v453
    %v527 = vpack.c.b16 %v456, %v455
    %v528 = vpack.c.b16 %v458, %v457
    %v529 = vpack.c.b16 %v460, %v459
    %v530 = vpack.c.b16 %v462, %v461
    %v531 = vpack.c.b16 %v464, %v463
    %v532 = vpack.c.b16 %v466, %v465
    %v533 = vpack.c.b16 %v468, %v467
    %v534 = vpack.c.b16 %v470, %v469
    %v535 = vpack.c.b16 %v472, %v471
    %v536 = vpack.c.b16 %v474, %v473
    %v537 = vpack.c.b16 %v476, %v475
    %v538 = vpack.c.b16 %v478, %v477
    %v539 = vpack.c.b16 %v480, %v479
    %v540 = vpack.c.b16 %v482, %v481
    %v541 = vpack.c.b16 %v484, %v483
    %v542 = vpack.c.b16 %v486, %v485
    %v543 = vpack.c.b16 %v488, %v487
    %v544 = vpack.c.b16 %v490, %v489
    %v545 = vpack.c.b16 %v492, %v491
    %v546 = vpack.c.b16 %v494, %v493
    %v547 = vpack.c.b16 %v496, %v495
    %v548 = vpack.c.b16 %v498, %v497
    %v549 = vpack.c.b16 %v500, %v499
    %v550 = vpack.c.b16 %v502, %v501
    %v551 = vpack.c.b16 %v504, %v503
    %v552 = vpack.c.b16 %v506, %v505
    %v553 = vpack.c.b16 %v508, %v507
    %v554 = vpack.c.b16 %v510, %v509
    %v555 = vpack.c.b16 %v512, %v511
    %v556 = vpack.c.b16 %v514, %v513
    %v557 = vpack.c.b16 %v516, %v515
    %v558 = vpack.c.b16 %v518, %v517
    %599 = vmatprep.subr.bf16.mxu0 0
    %600 = vmatpush1.bf16.msra.mxu0 %v526
    %601 = vmatprep.subr.bf16.mxu0 0
    %602 = vmatpush1.bf16.msra.mxu0 %v525
    %603 = vmatprep.subr.bf16.mxu0 0
    %604 = vmatpush1.bf16.msra.mxu0 %v524
    %605 = vmatprep.subr.bf16.mxu0 0
    %606 = vmatpush1.bf16.msra.mxu0 %v523
    %607 = vmatprep.subr.bf16.mxu0 0
    %608 = vmatpush1.bf16.msra.mxu0 %v522
    %609 = vmatprep.subr.bf16.mxu0 0
    %610 = vmatpush1.bf16.msra.mxu0 %v521
    %611 = vmatprep.subr.bf16.mxu0 0
    %612 = vmatpush1.bf16.msra.mxu0 %v520
    %613 = vmatprep.subr.bf16.mxu0 0
    %614 = vmatpush1.bf16.msra.mxu0 %v519
    %615 = vmatprep.subr.bf16.mxu0 0
    %616 = vmatpush2.bf16.msra.mxu0 %v534
    %617 = vmatprep.subr.bf16.mxu0 0
    %618 = vmatpush2.bf16.msra.mxu0 %v533
    %619 = vmatprep.subr.bf16.mxu0 0
    %620 = vmatpush2.bf16.msra.mxu0 %v532
    %621 = vmatprep.subr.bf16.mxu0 0
    %622 = vmatpush2.bf16.msra.mxu0 %v531
    %623 = vmatprep.subr.bf16.mxu0 0
    %624 = vmatpush2.bf16.msra.mxu0 %v530
    %625 = vmatprep.subr.bf16.mxu0 0
    %626 = vmatpush2.bf16.msra.mxu0 %v529
    %627 = vmatprep.subr.bf16.mxu0 0
    %628 = vmatpush2.bf16.msra.mxu0 %v528
    %629 = vmatprep.subr.bf16.mxu0 0
    %630 = vmatpush2.bf16.msra.mxu0 %v527
    %631 = vmatprep.mubr.bf16.mxu0 %v214
    %632 = vmatmul.mubr.bf16.gmra.mxu0 %v187
    %v633 = vpop.f32.mrf.mxu0
    %v634 = vadd.f32 %v357, %v633
    %v635 = vpop.f32.mrf.mxu0
    %v636 = vpop.f32.mrf.mxu0
    %v637 = vadd.f32 %v357, %v636
    %v638 = vpop.f32.mrf.mxu0
    %639 = vmatprep.mubr.bf16.mxu0 %v215
    %640 = vmatmul.mubr.bf16.gmra.mxu0 %v188
    %v641 = vpop.f32.mrf.mxu0
    %v642 = vadd.f32 %v357, %v641
    %v643 = vpop.f32.mrf.mxu0
    %v644 = vpop.f32.mrf.mxu0
    %v645 = vadd.f32 %v357, %v644
    %v646 = vpop.f32.mrf.mxu0
    %647 = vdwg.mxu0
    %648 = vmatprep.subr.bf16.mxu0 0
    %649 = vmatpush1.bf16.msra.mxu0 %v542
    %650 = vmatprep.subr.bf16.mxu0 0
    %651 = vmatpush1.bf16.msra.mxu0 %v541
    %652 = vmatprep.subr.bf16.mxu0 0
    %653 = vmatpush1.bf16.msra.mxu0 %v540
    %654 = vmatprep.subr.bf16.mxu0 0
    %655 = vmatpush1.bf16.msra.mxu0 %v539
    %656 = vmatprep.subr.bf16.mxu0 0
    %657 = vmatpush1.bf16.msra.mxu0 %v538
    %658 = vmatprep.subr.bf16.mxu0 0
    %659 = vmatpush1.bf16.msra.mxu0 %v537
    %660 = vmatprep.subr.bf16.mxu0 0
    %661 = vmatpush1.bf16.msra.mxu0 %v536
    %662 = vmatprep.subr.bf16.mxu0 0
    %663 = vmatpush1.bf16.msra.mxu0 %v535
    %664 = vmatprep.subr.bf16.mxu0 0
    %665 = vmatpush2.bf16.msra.mxu0 %v550
    %666 = vmatprep.subr.bf16.mxu0 0
    %667 = vmatpush2.bf16.msra.mxu0 %v549
    %668 = vmatprep.subr.bf16.mxu0 0
    %669 = vmatpush2.bf16.msra.mxu0 %v548
    %670 = vmatprep.subr.bf16.mxu0 0
    %671 = vmatpush2.bf16.msra.mxu0 %v547
    %672 = vmatprep.subr.bf16.mxu0 0
    %673 = vmatpush2.bf16.msra.mxu0 %v546
    %674 = vmatprep.subr.bf16.mxu0 0
    %675 = vmatpush2.bf16.msra.mxu0 %v545
    %676 = vmatprep.subr.bf16.mxu0 0
    %677 = vmatpush2.bf16.msra.mxu0 %v544
    %678 = vmatprep.subr.bf16.mxu0 0
    %679 = vmatpush2.bf16.msra.mxu0 %v543
    %680 = vmatprep.mubr.bf16.mxu0 %v243
    %681 = vmatmul.mubr.bf16.gmra.mxu0 %v216
    %v682 = vpop.f32.mrf.mxu0
    %v683 = vadd.f32 %v634, %v682
    %v684 = vpop.f32.mrf.mxu0
    %v685 = vpop.f32.mrf.mxu0
    %v686 = vadd.f32 %v637, %v685
    %v687 = vpop.f32.mrf.mxu0
    %688 = vmatprep.mubr.bf16.mxu0 %v244
    %689 = vmatmul.mubr.bf16.gmra.mxu0 %v217
    %v690 = vpop.f32.mrf.mxu0
    %v691 = vadd.f32 %v642, %v690
    %v692 = vpop.f32.mrf.mxu0
    %v693 = vpop.f32.mrf.mxu0
    %v694 = vadd.f32 %v645, %v693
    %v695 = vpop.f32.mrf.mxu0
    %696 = vdwg.mxu0
    %697 = vmatprep.subr.bf16.mxu0 0
    %698 = vmatpush1.bf16.msra.mxu0 %v558
    %699 = vmatprep.subr.bf16.mxu0 0
    %700 = vmatpush1.bf16.msra.mxu0 %v557
    %701 = vmatprep.subr.bf16.mxu0 0
    %702 = vmatpush1.bf16.msra.mxu0 %v556
    %703 = vmatprep.subr.bf16.mxu0 0
    %704 = vmatpush1.bf16.msra.mxu0 %v555
    %705 = vmatprep.subr.bf16.mxu0 0
    %706 = vmatpush1.bf16.msra.mxu0 %v554
    %707 = vmatprep.subr.bf16.mxu0 0
    %708 = vmatpush1.bf16.msra.mxu0 %v553
    %709 = vmatprep.subr.bf16.mxu0 0
    %710 = vmatpush1.bf16.msra.mxu0 %v552
    %711 = vmatprep.subr.bf16.mxu0 0
    %712 = vmatpush1.bf16.msra.mxu0 %v551
    %713 = vmatprep.subr.bf16.mxu0 0
    %714 = vmatpush2.bf16.msra.mxu0 0
    %715 = vmatprep.subr.bf16.mxu0 0
    %716 = vmatpush2.bf16.msra.mxu0 0
    %717 = vmatprep.subr.bf16.mxu0 0
    %718 = vmatpush2.bf16.msra.mxu0 0
    %719 = vmatprep.subr.bf16.mxu0 0
    %720 = vmatpush2.bf16.msra.mxu0 0
    %721 = vmatprep.subr.bf16.mxu0 0
    %722 = vmatpush2.bf16.msra.mxu0 0
    %723 = vmatprep.subr.bf16.mxu0 0
    %724 = vmatpush2.bf16.msra.mxu0 0
    %725 = vmatprep.subr.bf16.mxu0 0
    %726 = vmatpush2.bf16.msra.mxu0 0
    %727 = vmatprep.subr.bf16.mxu0 0
    %728 = vmatpush2.bf16.msra.mxu0 0
    %729 = vmatprep.mubr.bf16.mxu0 0
    %730 = vmatmul.mubr.bf16.gmra.mxu0 %v270
    %v731 = vpop.f32.mrf.mxu0
    %v732 = vadd.f32 %v683, %v731
    %v733 = vpop.f32.mrf.mxu0
    %v734 = vpop.f32.mrf.mxu0
    %v735 = vadd.f32 %v686, %v734
    %v736 = vpop.f32.mrf.mxu0
    %737 = vmatprep.mubr.bf16.mxu0 0
    %738 = vmatmul.mubr.bf16.gmra.mxu0 %v271
    %v739 = vpop.f32.mrf.mxu0
    %v740 = vadd.f32 %v691, %v739
    %v741 = vpop.f32.mrf.mxu0
    %v742 = vpop.f32.mrf.mxu0
    %v743 = vadd.f32 %v694, %v742
    %v744 = vpop.f32.mrf.mxu0
    %745 = vdwg.mxu0
    %v746 = vtanh.pop %v732
    %v747 = vtanh.pop %v735
    %v748 = vtanh.pop %v740
    %v749 = vtanh.pop %v743
    %v750 = vmul.f32 %v105, 0.1
    %v751 = vmul.f32 %v106, 0.1
    %v752 = vmul.f32 %v107, 0.1
    %v753 = vmul.f32 %v108, 0.1
    %v754 = vadd.f32 %v746, %v750
    %v755 = vadd.f32 %v747, %v751
    %v756 = vadd.f32 %v748, %v752
    %v757 = vadd.f32 %v749, %v753
    %v758 = vld [vmem:[#allocation7] sm:$0xff]
    %v759 = vld [vmem:[#allocation7 + $0x8] sm:$0xff]
    %v760 = vld [vmem:[#allocation7 + $0x10] sm:$0xff]
    %v761 = vld [vmem:[#allocation7 + $0x18] sm:$0xff]
    %vm762 = vcmask 261120
    %v764 = vsel %vm762, %v758, 0
    %v767 = vsel %vm762, %v759, 0
    %v770 = vsel %vm762, %v760, 0
    %v773 = vsel %vm762, %v761, 0
    %775 = vmatprep.subr.mxu0 0.0
    %776 = vmatpush1.msra.mxu0 0.0
    %777 = vmatprep.subr.mxu0 0.0
    %778 = vmatpush1.msra.mxu0 0.0
    %779 = vmatprep.subr.mxu0 0.0
    %780 = vmatpush1.msra.mxu0 0.0
    %781 = vmatprep.subr.mxu0 0.0
    %782 = vmatpush1.msra.mxu0 0.0
    %783 = vmatprep.subr.mxu0 0.0
    %784 = vmatpush1.msra.mxu0 0.0
    %785 = vmatprep.subr.mxu0 0.0
    %786 = vmatpush1.msra.mxu0 0.0
    %787 = vmatprep.subr.mxu0 0.0
    %788 = vmatpush1.msra.mxu0 0.0
    %789 = vmatprep.subr.mxu0 0.0
    %790 = vmatpush1.msra.mxu0 0.0
    %791 = vmatprep.subr.mxu0 0.0
    %792 = vmatpush1.msra.mxu0 0.0
    %793 = vmatprep.subr.mxu0 0.0
    %794 = vmatpush1.msra.mxu0 0.0
    %795 = vmatprep.subr.mxu0 0.0
    %796 = vmatpush1.msra.mxu0 0.0
    %797 = vmatprep.subr.mxu0 0.0
    %798 = vmatpush1.msra.mxu0 0.0
    %799 = vmatprep.subr.mxu0 0.0
    %800 = vmatpush1.msra.mxu0 %v757
    %801 = vmatprep.subr.mxu0 0.0
    %802 = vmatpush1.msra.mxu0 %v756
    %803 = vmatprep.subr.mxu0 0.0
    %804 = vmatpush1.msra.mxu0 %v755
    %805 = vmatprep.subr.mxu0 0.0
    %806 = vmatpush1.msra.mxu0 %v754
    %807 = vmatprep.subr.mxu0 0.0
    %808 = vmatpush2.msra.mxu0 0.0
    %809 = vmatprep.subr.mxu0 0.0
    %810 = vmatpush2.msra.mxu0 0.0
    %811 = vmatprep.subr.mxu0 0.0
    %812 = vmatpush2.msra.mxu0 0.0
    %813 = vmatprep.subr.mxu0 0.0
    %814 = vmatpush2.msra.mxu0 0.0
    %815 = vmatprep.subr.mxu0 0.0
    %816 = vmatpush2.msra.mxu0 0.0
    %817 = vmatprep.subr.mxu0 0.0
    %818 = vmatpush2.msra.mxu0 0.0
    %819 = vmatprep.subr.mxu0 0.0
    %820 = vmatpush2.msra.mxu0 0.0
    %821 = vmatprep.subr.mxu0 0.0
    %822 = vmatpush2.msra.mxu0 0.0
    %823 = vmatprep.subr.mxu0 0.0
    %824 = vmatpush2.msra.mxu0 0.0
    %825 = vmatprep.subr.mxu0 0.0
    %826 = vmatpush2.msra.mxu0 0.0
    %827 = vmatprep.subr.mxu0 0.0
    %828 = vmatpush2.msra.mxu0 0.0
    %829 = vmatprep.subr.mxu0 0.0
    %830 = vmatpush2.msra.mxu0 0.0
    %831 = vmatprep.subr.mxu0 0.0
    %832 = vmatpush2.msra.mxu0 0.0
    %833 = vmatprep.subr.mxu0 0.0
    %834 = vmatpush2.msra.mxu0 0.0
    %835 = vmatprep.subr.mxu0 0.0
    %836 = vmatpush2.msra.mxu0 0.0
    %837 = vmatprep.subr.mxu0 0.0
    %838 = vmatpush2.msra.mxu0 0.0
    %839 = vmatprep.mubr.f32.mxu0 0.0
    %840 = vmatmul.mubr.f32.gmra.mxu0 %v764
    %v841 = vpop.f32.mrf.mxu0
    %v842 = vadd.f32 0.0, %v841
    %v843 = vpop.f32.mrf.mxu0
    %844 = vmatprep.mubr.f32.mxu0 0.0
    %845 = vmatmul.mubr.f32.gmra.mxu0 %v767
    %v846 = vpop.f32.mrf.mxu0
    %v847 = vadd.f32 0.0, %v846
    %v848 = vpop.f32.mrf.mxu0
    %849 = vmatprep.mubr.f32.mxu0 0.0
    %850 = vmatmul.mubr.f32.gmra.mxu0 %v770
    %v851 = vpop.f32.mrf.mxu0
    %v852 = vadd.f32 0.0, %v851
    %v853 = vpop.f32.mrf.mxu0
    %854 = vmatprep.mubr.f32.mxu0 0.0
    %855 = vmatmul.mubr.f32.gmra.mxu0 %v773
    %v856 = vpop.f32.mrf.mxu0
    %v857 = vadd.f32 0.0, %v856
    %v858 = vpop.f32.mrf.mxu0
    %859 = vdwg.mxu0
    %v860 = vmax.f32 %v842, -10.0
    %v861 = vmax.f32 %v847, -10.0
    %v862 = vmax.f32 %v852, -10.0
    %v863 = vmax.f32 %v857, -10.0
    %v864 = vmin.f32 %v860, 10.0
    %v865 = vmin.f32 %v861, 10.0
    %v866 = vmin.f32 %v862, 10.0
    %v867 = vmin.f32 %v863, 10.0
    %868 = vadd.xlane.f32.xlu0 %v864
    %v869 = vpop.xlane.xlu0 %868
    %870 = vadd.xlane.f32.xlu0 %v865
    %v871 = vpop.xlane.xlu0 %870
    %872 = vadd.xlane.f32.xlu0 %v866
    %v873 = vpop.xlane.xlu0 %872
    %874 = vadd.xlane.f32.xlu0 %v867
    %v875 = vpop.xlane.xlu0 %874
    %v876 = vrcp.pop 128.0
    %v877 = vmul.f32 %v869, %v876
    %v878 = vmul.f32 %v871, %v876
    %v879 = vmul.f32 %v873, %v876
    %v880 = vmul.f32 %v875, %v876
    %v881 = vsub.f32 %v864, %v877
    %v882 = vsub.f32 %v865, %v878
    %v883 = vsub.f32 %v866, %v879
    %v884 = vsub.f32 %v867, %v880
    %v885 = vmul.f32 %v881, %v881
    %v886 = vmul.f32 %v882, %v882
    %v887 = vmul.f32 %v883, %v883
    %v888 = vmul.f32 %v884, %v884
    %889 = vadd.xlane.f32.xlu0 %v885
    %v890 = vpop.xlane.xlu0 %889
    %891 = vadd.xlane.f32.xlu0 %v886
    %v892 = vpop.xlane.xlu0 %891
    %893 = vadd.xlane.f32.xlu0 %v887
    %v894 = vpop.xlane.xlu0 %893
    %895 = vadd.xlane.f32.xlu0 %v888
    %v896 = vpop.xlane.xlu0 %895
    %v897 = vmul.f32 %v890, %v876
    %v898 = vmul.f32 %v892, %v876
    %v899 = vmul.f32 %v894, %v876
    %v900 = vmul.f32 %v896, %v876
    %v901 = vadd.f32 %v897, 1e-05
    %v902 = vadd.f32 %v898, 1e-05
    %v903 = vadd.f32 %v899, 1e-05
    %v904 = vadd.f32 %v900, 1e-05
    %v905 = vrsqrt.pop %v901
    %v906 = vrsqrt.pop %v902
    %v907 = vrsqrt.pop %v903
    %v908 = vrsqrt.pop %v904
    %v909 = vmul.f32 %v881, %v905
    %v910 = vmul.f32 %v882, %v906
    %v911 = vmul.f32 %v883, %v907
    %v912 = vmul.f32 %v884, %v908
    %v913 = vld [vmem:[%s6] sm:$0x1]
    %v915 = vlaneseq
    %v916 = vshrl.u32 %v915, 7
    %v917 = vsub.s32 0, %v916
    %v918 = vrot.slane %v913, %v917
    %v920 = vmul.f32 %v909, %v918
    %v921 = vmul.f32 %v910, %v918
    %v922 = vmul.f32 %v911, %v918
    %v923 = vmul.f32 %v912, %v918
    %v924 = vld [vmem:[%s7] sm:$0x1]
    %v926 = vlaneseq
    %v927 = vshrl.u32 %v926, 7
    %v928 = vsub.s32 0, %v927
    %v929 = vrot.slane %v924, %v928
    %v931 = vadd.f32 %v920, %v929
    %v932 = vadd.f32 %v921, %v929
    %v933 = vadd.f32 %v922, %v929
    %v934 = vadd.f32 %v923, %v929
    %v935 = vld [vmem:[#allocation8] sm:$0xff]
    %v936 = vld [vmem:[#allocation8 + $0x8] sm:$0xff]
    %v937 = vld [vmem:[#allocation8 + $0x10] sm:$0xff]
    %v938 = vld [vmem:[#allocation8 + $0x18] sm:$0xff]
    %v940 = vsel %vm762, %v935, 0
    %v943 = vsel %vm762, %v936, 0
    %v946 = vsel %vm762, %v937, 0
    %v949 = vsel %vm762, %v938, 0
    %951 = vmatprep.subr.mxu0 0.0
    %952 = vmatpush1.msra.mxu0 0.0
    %953 = vmatprep.subr.mxu0 0.0
    %954 = vmatpush1.msra.mxu0 0.0
    %955 = vmatprep.subr.mxu0 0.0
    %956 = vmatpush1.msra.mxu0 0.0
    %957 = vmatprep.subr.mxu0 0.0
    %958 = vmatpush1.msra.mxu0 0.0
    %959 = vmatprep.subr.mxu0 0.0
    %960 = vmatpush1.msra.mxu0 0.0
    %961 = vmatprep.subr.mxu0 0.0
    %962 = vmatpush1.msra.mxu0 0.0
    %963 = vmatprep.subr.mxu0 0.0
    %964 = vmatpush1.msra.mxu0 0.0
    %965 = vmatprep.subr.mxu0 0.0
    %966 = vmatpush1.msra.mxu0 0.0
    %967 = vmatprep.subr.mxu0 0.0
    %968 = vmatpush1.msra.mxu0 0.0
    %969 = vmatprep.subr.mxu0 0.0
    %970 = vmatpush1.msra.mxu0 0.0
    %971 = vmatprep.subr.mxu0 0.0
    %972 = vmatpush1.msra.mxu0 0.0
    %973 = vmatprep.subr.mxu0 0.0
    %974 = vmatpush1.msra.mxu0 0.0
    %975 = vmatprep.subr.mxu0 0.0
    %976 = vmatpush1.msra.mxu0 %v934
    %977 = vmatprep.subr.mxu0 0.0
    %978 = vmatpush1.msra.mxu0 %v933
    %979 = vmatprep.subr.mxu0 0.0
    %980 = vmatpush1.msra.mxu0 %v932
    %981 = vmatprep.subr.mxu0 0.0
    %982 = vmatpush1.msra.mxu0 %v931
    %983 = vmatprep.subr.mxu0 0.0
    %984 = vmatpush2.msra.mxu0 0.0
    %985 = vmatprep.subr.mxu0 0.0
    %986 = vmatpush2.msra.mxu0 0.0
    %987 = vmatprep.subr.mxu0 0.0
    %988 = vmatpush2.msra.mxu0 0.0
    %989 = vmatprep.subr.mxu0 0.0
    %990 = vmatpush2.msra.mxu0 0.0
    %991 = vmatprep.subr.mxu0 0.0
    %992 = vmatpush2.msra.mxu0 0.0
    %993 = vmatprep.subr.mxu0 0.0
    %994 = vmatpush2.msra.mxu0 0.0
    %995 = vmatprep.subr.mxu0 0.0
    %996 = vmatpush2.msra.mxu0 0.0
    %997 = vmatprep.subr.mxu0 0.0
    %998 = vmatpush2.msra.mxu0 0.0
    %999 = vmatprep.subr.mxu0 0.0
    %1000 = vmatpush2.msra.mxu0 0.0
    %1001 = vmatprep.subr.mxu0 0.0
    %1002 = vmatpush2.msra.mxu0 0.0
    %1003 = vmatprep.subr.mxu0 0.0
    %1004 = vmatpush2.msra.mxu0 0.0
    %1005 = vmatprep.subr.mxu0 0.0
    %1006 = vmatpush2.msra.mxu0 0.0
    %1007 = vmatprep.subr.mxu0 0.0
    %1008 = vmatpush2.msra.mxu0 0.0
    %1009 = vmatprep.subr.mxu0 0.0
    %1010 = vmatpush2.msra.mxu0 0.0
    %1011 = vmatprep.subr.mxu0 0.0
    %1012 = vmatpush2.msra.mxu0 0.0
    %1013 = vmatprep.subr.mxu0 0.0
    %1014 = vmatpush2.msra.mxu0 0.0
    %1015 = vmatprep.mubr.f32.mxu0 0.0
    %1016 = vmatmul.mubr.f32.gmra.mxu0 %v940
    %v1017 = vpop.f32.mrf.mxu0
    %v1018 = vadd.f32 0.0, %v1017
    %v1019 = vpop.f32.mrf.mxu0
    %1020 = vmatprep.mubr.f32.mxu0 0.0
    %1021 = vmatmul.mubr.f32.gmra.mxu0 %v943
    %v1022 = vpop.f32.mrf.mxu0
    %v1023 = vadd.f32 0.0, %v1022
    %v1024 = vpop.f32.mrf.mxu0
    %1025 = vmatprep.mubr.f32.mxu0 0.0
    %1026 = vmatmul.mubr.f32.gmra.mxu0 %v946
    %v1027 = vpop.f32.mrf.mxu0
    %v1028 = vadd.f32 0.0, %v1027
    %v1029 = vpop.f32.mrf.mxu0
    %1030 = vmatprep.mubr.f32.mxu0 0.0
    %1031 = vmatmul.mubr.f32.gmra.mxu0 %v949
    %v1032 = vpop.f32.mrf.mxu0
    %v1033 = vadd.f32 0.0, %v1032
    %v1034 = vpop.f32.mrf.mxu0
    %1035 = vdwg.mxu0
    %1036 = vst [vmem:[#allocation10] sm:$0xff] %v1018
    %1037 = vst [vmem:[#allocation10 + $0x8] sm:$0xff] %v1023
    %1038 = vst [vmem:[#allocation10 + $0x10] sm:$0xff] %v1028
    %1039 = vst [vmem:[#allocation10 + $0x18] sm:$0xff] %v1033
    // Predicated region
    $region50: #{tpu_custom_call.1} parent=1 // pred_check
      _
    $region51: #{tpu_custom_call.1} parent=1 // pred_check_branch
      %1041 = sbr.rel (0) target = $region53
    $region52: #{tpu_custom_call.1} parent=1 // pred_region
      %s1043 = ssub.s32 512, 512
      %1044 = vsyncadd [#allocation4], %s1043
      %s1045 = sshll.u32 [#allocation10], 4
      %s1046 = int_to_ptr.vmem [resolvable:$true] %s1045
      %1051 = dma.vmem_to_hbm [thread:$0]  %s1046, 512, %s8, [#allocation4], 128, 128, 8
    $region53: #{tpu_custom_call.1} parent=1 // pred_fallthru
      _
    // Predicated region
    $region54: #{tpu_custom_call.1} parent=1 // pred_check
      _
    $region55: #{tpu_custom_call.1} parent=1 // pred_check_branch
      %1053 = sbr.rel (0) target = $region57
    $region56: #{tpu_custom_call.1} parent=1 // pred_region
      %1054 = dma.done [#allocation4], 512
    $region57: #{tpu_custom_call.1} parent=1 // pred_fallthru
      _
    %1055 = vsyncpa [#allocation3], 1
    %1056 = vsyncpa [#allocation6], 1
    %1057 = vsyncpa [#allocation9], 1
    %1058 = vsyncpa [#allocation4], 1

</llo_original>
